<compile_context>
chip_gen: v7x
topology: tpu7x:2x2x1
jax: 0.10.0
libtpu: 0.0.40
codegen_flags: <defaults>
</compile_context>

<pallas_src>
import jax
import jax.numpy as jnp
from jax.experimental import pallas as pl
from jax.experimental.pallas import tpu as pltpu


def _gather_kernel(idx_ref, z_ref, out_ref):
    # idx_ref: (padded_batch,) int32 in SMEM (scalar prefetch)
    # z_ref:   (num_latents, latent_dim) in VMEM (whole table, resident)
    # out_ref: (rows_per_step, latent_dim) output tile in VMEM
    i = pl.program_id(0)
    rows_per_step = out_ref.shape[0]
    base = i * rows_per_step
    # rows_per_step is small and static -> unrolled at trace time.
    for j in range(rows_per_step):
        row = idx_ref[base + j]                       # scalar read from SMEM
        out_ref[pl.ds(j, 1), :] = z_ref[pl.ds(row, 1), :]   # VMEM -> VMEM row copy


def latent_var_forward(Z, indices, *, rows_per_step=8):
    """Pallas equivalent of `latent_var.forward`: returns Z[indices].

    Z:        (num_latents, latent_dim) float32
    indices:  (batch,)                  int32
    returns:  (batch, latent_dim)       float32
    """
    num_latents, latent_dim = Z.shape
    batch = indices.shape[0]

    # Guard out-of-range indices without a host sync (jit-safe). The original
    # module only printed 'error'; clamping prevents silent OOB reads.
    indices = jnp.clip(indices.astype(jnp.int32), 0, num_latents - 1)

    # Pad the batch up to a multiple of rows_per_step so output blocks are
    # full (8, 128)-aligned tiles (unmasked stores).
    padded = pl.cdiv(batch, rows_per_step) * rows_per_step
    if padded != batch:
        indices = jnp.pad(indices, (0, padded - batch))

    grid = (padded // rows_per_step,)

    grid_spec = pltpu.PrefetchScalarGridSpec(
        num_scalar_prefetch=1,        # indices -> SMEM before the grid runs
        grid=grid,
        in_specs=[
            # Whole table resident in VMEM; same block for every grid step.
            pl.BlockSpec((num_latents, latent_dim), lambda i, idx: (0, 0)),
        ],
        out_specs=pl.BlockSpec((rows_per_step, latent_dim),
                               lambda i, idx: (i, 0)),
    )

    bytes_accessed = (Z.size * Z.dtype.itemsize
                      + padded * latent_dim * Z.dtype.itemsize
                      + padded * 4)

    out = pl.pallas_call(
        _gather_kernel,
        out_shape=jax.ShapeDtypeStruct((padded, latent_dim), Z.dtype),
        grid_spec=grid_spec,
        compiler_params=pltpu.CompilerParams(
            dimension_semantics=("parallel",),   # independent blocks; v7x 2-TC
        ),
        cost_estimate=pl.CostEstimate(
            flops=0, transcendentals=0, bytes_accessed=bytes_accessed),
    )(indices, Z)

    return out[:batch]


if __name__ == "__main__":
    key = jax.random.PRNGKey(0)
    k_z, k_idx = jax.random.split(key)

    num_latents = 64     # dim_Z in the PyTorch module
    latent_dim = 128     # lane-aligned latent dimension
    batch = 8            # number of indices looked up per forward call

    # Deterministic "parameter" Z (synthetic init, not a checkpoint).
    Z = jax.random.normal(k_z, (num_latents, latent_dim), dtype=jnp.float32)
    indices = jax.random.randint(
        k_idx, (batch,), minval=0, maxval=num_latents, dtype=jnp.int32
    )

    out = latent_var_forward(Z, indices)
    out = jax.block_until_ready(out)

    # Correctness check against plain JAX gather (the reference semantics).
    ref = Z[indices]
    assert out.shape == (batch, latent_dim)
    assert jnp.allclose(out, ref), "Pallas gather mismatch vs Z[indices]"

    # Also check the jitted path (the wrapper is now jit-safe).
    out_jit = jax.block_until_ready(jax.jit(latent_var_forward)(Z, indices))
    assert jnp.allclose(out_jit, ref), "Pallas gather mismatch under jit"

    print("KERNEL_OK")
</pallas_src>

<mosaic_0001>
module attributes {stable_mosaic.version = 11 : i64} {
  func.func @_gather_kernel(%arg0: i32, %arg1: memref<8xi32, #tpu.memory_space<smem>>, %arg2: memref<64x128xf32, #tpu.memory_space<vmem>>, %arg3: memref<8x128xf32, #tpu.memory_space<vmem>>) attributes {dimension_semantics = [#tpu.dimension_semantics<parallel>], iteration_bounds = array<i64: 1>, scalar_prefetch = 1 : i64, scratch_operands = 0 : i64, tpu.core_type = #tpu.core_type<tc>, window_params = [{pipeline_mode = #tpu.pipeline_mode<synchronous>, transform_indices = @transform_0, window_bounds = array<i64: 64, 128>}, {transform_indices = @transform_1, window_bounds = array<i64: 8, 128>}]} {
    %c8_i32 = arith.constant 8 : i32
    %0 = arith.muli %arg0, %c8_i32 : i32
    %c0_i32 = arith.constant 0 : i32
    %1 = arith.addi %0, %c0_i32 : i32
    %2 = arith.index_cast %1 : i32 to index
    %3 = memref.load %arg1[%2] : memref<8xi32, #tpu.memory_space<smem>>
    %4 = arith.index_cast %3 : i32 to index
    %c0 = arith.constant 0 : index
    %5 = vector.load %arg2[%4, %c0] : memref<64x128xf32, #tpu.memory_space<vmem>>, vector<1x128xf32>
    %c0_0 = arith.constant 0 : index
    %c0_1 = arith.constant 0 : index
    %6 = vector.load %arg3[%c0_0, %c0_1] : memref<8x128xf32, #tpu.memory_space<vmem>>, vector<1x128xf32>
    tpu.vector_store %arg3[%c0_0, %c0_1], %5 {strides = array<i32>} : memref<8x128xf32, #tpu.memory_space<vmem>>, vector<1x128xf32>,
    %c1_i32 = arith.constant 1 : i32
    %7 = arith.addi %0, %c1_i32 : i32
    %8 = arith.index_cast %7 : i32 to index
    %9 = memref.load %arg1[%8] : memref<8xi32, #tpu.memory_space<smem>>
    %10 = arith.index_cast %9 : i32 to index
    %c0_2 = arith.constant 0 : index
    %11 = vector.load %arg2[%10, %c0_2] : memref<64x128xf32, #tpu.memory_space<vmem>>, vector<1x128xf32>
    %c1 = arith.constant 1 : index
    %c0_3 = arith.constant 0 : index
    %12 = vector.load %arg3[%c1, %c0_3] : memref<8x128xf32, #tpu.memory_space<vmem>>, vector<1x128xf32>
    tpu.vector_store %arg3[%c1, %c0_3], %11 {strides = array<i32>} : memref<8x128xf32, #tpu.memory_space<vmem>>, vector<1x128xf32>,
    %c2_i32 = arith.constant 2 : i32
    %13 = arith.addi %0, %c2_i32 : i32
    %14 = arith.index_cast %13 : i32 to index
    %15 = memref.load %arg1[%14] : memref<8xi32, #tpu.memory_space<smem>>
    %16 = arith.index_cast %15 : i32 to index
    %c0_4 = arith.constant 0 : index
    %17 = vector.load %arg2[%16, %c0_4] : memref<64x128xf32, #tpu.memory_space<vmem>>, vector<1x128xf32>
    %c2 = arith.constant 2 : index
    %c0_5 = arith.constant 0 : index
    %18 = vector.load %arg3[%c2, %c0_5] : memref<8x128xf32, #tpu.memory_space<vmem>>, vector<1x128xf32>
    tpu.vector_store %arg3[%c2, %c0_5], %17 {strides = array<i32>} : memref<8x128xf32, #tpu.memory_space<vmem>>, vector<1x128xf32>,
    %c3_i32 = arith.constant 3 : i32
    %19 = arith.addi %0, %c3_i32 : i32
    %20 = arith.index_cast %19 : i32 to index
    %21 = memref.load %arg1[%20] : memref<8xi32, #tpu.memory_space<smem>>
    %22 = arith.index_cast %21 : i32 to index
    %c0_6 = arith.constant 0 : index
    %23 = vector.load %arg2[%22, %c0_6] : memref<64x128xf32, #tpu.memory_space<vmem>>, vector<1x128xf32>
    %c3 = arith.constant 3 : index
    %c0_7 = arith.constant 0 : index
    %24 = vector.load %arg3[%c3, %c0_7] : memref<8x128xf32, #tpu.memory_space<vmem>>, vector<1x128xf32>
    tpu.vector_store %arg3[%c3, %c0_7], %23 {strides = array<i32>} : memref<8x128xf32, #tpu.memory_space<vmem>>, vector<1x128xf32>,
    %c4_i32 = arith.constant 4 : i32
    %25 = arith.addi %0, %c4_i32 : i32
    %26 = arith.index_cast %25 : i32 to index
    %27 = memref.load %arg1[%26] : memref<8xi32, #tpu.memory_space<smem>>
    %28 = arith.index_cast %27 : i32 to index
    %c0_8 = arith.constant 0 : index
    %29 = vector.load %arg2[%28, %c0_8] : memref<64x128xf32, #tpu.memory_space<vmem>>, vector<1x128xf32>
    %c4 = arith.constant 4 : index
    %c0_9 = arith.constant 0 : index
    %30 = vector.load %arg3[%c4, %c0_9] : memref<8x128xf32, #tpu.memory_space<vmem>>, vector<1x128xf32>
    tpu.vector_store %arg3[%c4, %c0_9], %29 {strides = array<i32>} : memref<8x128xf32, #tpu.memory_space<vmem>>, vector<1x128xf32>,
    %c5_i32 = arith.constant 5 : i32
    %31 = arith.addi %0, %c5_i32 : i32
    %32 = arith.index_cast %31 : i32 to index
    %33 = memref.load %arg1[%32] : memref<8xi32, #tpu.memory_space<smem>>
    %34 = arith.index_cast %33 : i32 to index
    %c0_10 = arith.constant 0 : index
    %35 = vector.load %arg2[%34, %c0_10] : memref<64x128xf32, #tpu.memory_space<vmem>>, vector<1x128xf32>
    %c5 = arith.constant 5 : index
    %c0_11 = arith.constant 0 : index
    %36 = vector.load %arg3[%c5, %c0_11] : memref<8x128xf32, #tpu.memory_space<vmem>>, vector<1x128xf32>
    tpu.vector_store %arg3[%c5, %c0_11], %35 {strides = array<i32>} : memref<8x128xf32, #tpu.memory_space<vmem>>, vector<1x128xf32>,
    %c6_i32 = arith.constant 6 : i32
    %37 = arith.addi %0, %c6_i32 : i32
    %38 = arith.index_cast %37 : i32 to index
    %39 = memref.load %arg1[%38] : memref<8xi32, #tpu.memory_space<smem>>
    %40 = arith.index_cast %39 : i32 to index
    %c0_12 = arith.constant 0 : index
    %41 = vector.load %arg2[%40, %c0_12] : memref<64x128xf32, #tpu.memory_space<vmem>>, vector<1x128xf32>
    %c6 = arith.constant 6 : index
    %c0_13 = arith.constant 0 : index
    %42 = vector.load %arg3[%c6, %c0_13] : memref<8x128xf32, #tpu.memory_space<vmem>>, vector<1x128xf32>
    tpu.vector_store %arg3[%c6, %c0_13], %41 {strides = array<i32>} : memref<8x128xf32, #tpu.memory_space<vmem>>, vector<1x128xf32>,
    %c7_i32 = arith.constant 7 : i32
    %43 = arith.addi %0, %c7_i32 : i32
    %44 = arith.index_cast %43 : i32 to index
    %45 = memref.load %arg1[%44] : memref<8xi32, #tpu.memory_space<smem>>
    %46 = arith.index_cast %45 : i32 to index
    %c0_14 = arith.constant 0 : index
    %47 = vector.load %arg2[%46, %c0_14] : memref<64x128xf32, #tpu.memory_space<vmem>>, vector<1x128xf32>
    %c7 = arith.constant 7 : index
    %c0_15 = arith.constant 0 : index
    %48 = vector.load %arg3[%c7, %c0_15] : memref<8x128xf32, #tpu.memory_space<vmem>>, vector<1x128xf32>
    tpu.vector_store %arg3[%c7, %c0_15], %47 {strides = array<i32>} : memref<8x128xf32, #tpu.memory_space<vmem>>, vector<1x128xf32>,
    return
  }
  func.func @transform_0(%arg0: i32, %arg1: memref<8xi32, #tpu.memory_space<smem>>) -> (i32, i32) {
    %c0_i32 = arith.constant 0 : i32
    %c0_i32_0 = arith.constant 0 : i32
    %c0_i32_1 = arith.constant 0 : i32
    return %c0_i32, %c0_i32_0 : i32, i32
  }
  func.func @transform_1(%arg0: i32, %arg1: memref<8xi32, #tpu.memory_space<smem>>) -> (i32, i32) {
    %c0_i32 = arith.constant 0 : i32
    %c0_i32_0 = arith.constant 0 : i32
    return %arg0, %c0_i32 : i32, i32
  }
}

</mosaic_0001>

<llo_original>
// kernel: tpu_custom_call.1
$region0: #{tpu_custom_call.1}
  #allocation0 [shape = 'u32[]', space=smem, size = 0x4, offset = 0x4, fixed_abs, tag = 'smem constant byte address 0x4 - core index']
  #allocation1 [shape = 'u32[144,128]{1,0:T(1,128)}', space=vmem, size = 0x12000, scoped, tag = 'internal scratch']
  #allocation2 [shape = 's32[1]{0}', space=sflag, size = 0x4, scoped, tag = 'scoped memory for tpu_custom_call.1']
  #allocation3 [shape = 'u8[512]{0}', space=smem, size = 0x200, scoped, tag = 'prefetched SMEM operand 0']
  %s0 = inlined_call_operand.hbm [shape: s32[8], index: 0, kind: input, shape index: {}]
  %s1 = inlined_call_operand.hbm [shape: f32[64,128], index: 1, kind: input, shape index: {}]
  %s2 = inlined_call_operand.hbm [shape: f32[8,128], index: 2, kind: output, shape index: {}]
  %s3 = sld [smem:[#allocation0]]
  $region18: #{tpu_custom_call.1} parent=0
    _
  %s5 = ssub.s32 1, %s3
  %s6 = scalar_select 0, %s5, %s3
  %8 = dma.hbm_to_smem %s0, 16, [#allocation3], [#allocation2]
  %9 = dma.done [#allocation2], 16
  %10 = sfence
  $region1: #{tpu_custom_call.1} parent=0
    #allocation4 [shape = 'u8[32768]{0}', space=vmem, size = 0x8000, scoped, tag = 'input window, operand 1, single buffered']
    #allocation5 [shape = 's32[1]{0}', space=sflag, size = 0x4, scoped, tag = 'scoped memory for tpu_custom_call.1']
    #allocation6 [shape = 's32[1]{0}', space=sflag, size = 0x4, scoped, tag = 'scoped memory for tpu_custom_call.1']
    #allocation7 [shape = 'u8[4096]{0}', space=vmem, size = 0x1000, scoped, tag = 'output window, operand 0, single buffered']
    %11 = vsyncpa [#allocation5], 0
    %12 = vsyncpa [#allocation6], 0
    // Predicated region
    $region2: #{tpu_custom_call.1} parent=1 // pred_check
      _
    $region3: #{tpu_custom_call.1} parent=1 // pred_check_branch
      %14 = sbr.rel (0) target = $region5
    $region4: #{tpu_custom_call.1} parent=1 // pred_region
      %s16 = ssub.s32 1024, 1024
      %17 = vsyncadd [#allocation5], %s16
      %s18 = sshll.u32 [#allocation4], 4
      %s19 = int_to_ptr.vmem [resolvable:$true] %s18
      %24 = dma.hbm_to_vmem [thread:$0]  %s1, 1024, %s19, [#allocation5], 128, 128, 8
    $region5: #{tpu_custom_call.1} parent=1 // pred_fallthru
      _
    // Predicated region
    $region6: #{tpu_custom_call.1} parent=1 // pred_check
      _
    $region7: #{tpu_custom_call.1} parent=1 // pred_check_branch
      %26 = sbr.rel (0) target = $region9
    $region8: #{tpu_custom_call.1} parent=1 // pred_region
      %27 = dma.done [#allocation5], 1024
    $region9: #{tpu_custom_call.1} parent=1 // pred_fallthru
      _
    %s28 = smul.u32 0, 8
    %s29 = sld [smem:[#allocation3 + %s28]]
    %s30 = scalar_lea.vmem [#allocation4], %s29
    %v31 = vld [vmem:[%s30] sm:$0x1]
    %32 = vst [vmem:[#allocation7] sm:$0x1] %v31
    %s33 = sadd.s32 %s28, 1
    %s34 = sld [smem:[#allocation3 + %s33]]
    %s35 = scalar_lea.vmem [#allocation4], %s34
    %v36 = vld [vmem:[%s35] sm:$0x1]
    %37 = vst [vmem:[#allocation7 + $0x1] sm:$0x1] %v36
    %s38 = sadd.s32 %s28, 2
    %s39 = sld [smem:[#allocation3 + %s38]]
    %s40 = scalar_lea.vmem [#allocation4], %s39
    %v41 = vld [vmem:[%s40] sm:$0x1]
    %42 = vst [vmem:[#allocation7 + $0x2] sm:$0x1] %v41
    %s43 = sadd.s32 %s28, 3
    %s44 = sld [smem:[#allocation3 + %s43]]
    %s45 = scalar_lea.vmem [#allocation4], %s44
    %v46 = vld [vmem:[%s45] sm:$0x1]
    %47 = vst [vmem:[#allocation7 + $0x3] sm:$0x1] %v46
    %s48 = sadd.s32 %s28, 4
    %s49 = sld [smem:[#allocation3 + %s48]]
    %s50 = scalar_lea.vmem [#allocation4], %s49
    %v51 = vld [vmem:[%s50] sm:$0x1]
    %52 = vst [vmem:[#allocation7 + $0x4] sm:$0x1] %v51
    %s53 = sadd.s32 %s28, 5
    %s54 = sld [smem:[#allocation3 + %s53]]
    %s55 = scalar_lea.vmem [#allocation4], %s54
    %v56 = vld [vmem:[%s55] sm:$0x1]
    %57 = vst [vmem:[#allocation7 + $0x5] sm:$0x1] %v56
    %s58 = sadd.s32 %s28, 6
    %s59 = sld [smem:[#allocation3 + %s58]]
    %s60 = scalar_lea.vmem [#allocation4], %s59
    %v61 = vld [vmem:[%s60] sm:$0x1]
    %62 = vst [vmem:[#allocation7 + $0x6] sm:$0x1] %v61
    %s63 = sadd.s32 %s28, 7
    %s64 = sld [smem:[#allocation3 + %s63]]
    %s65 = scalar_lea.vmem [#allocation4], %s64
    %v66 = vld [vmem:[%s65] sm:$0x1]
    %67 = vst [vmem:[#allocation7 + $0x7] sm:$0x1] %v66
    // Predicated region
    $region10: #{tpu_custom_call.1} parent=1 // pred_check
      _
    $region11: #{tpu_custom_call.1} parent=1 // pred_check_branch
      %69 = sbr.rel (0) target = $region13
    $region12: #{tpu_custom_call.1} parent=1 // pred_region
      %s71 = ssub.s32 128, 128
      %72 = vsyncadd [#allocation6], %s71
      %s74 = sshll.u32 [#allocation7], 4
      %s75 = int_to_ptr.vmem [resolvable:$true] %s74
      %77 = dma.vmem_to_hbm [thread:$0]  %s75, 128, %s2, [#allocation6]
    $region13: #{tpu_custom_call.1} parent=1 // pred_fallthru
      _
    // Predicated region
    $region14: #{tpu_custom_call.1} parent=1 // pred_check
      _
    $region15: #{tpu_custom_call.1} parent=1 // pred_check_branch
      %79 = sbr.rel (0) target = $region17
    $region16: #{tpu_custom_call.1} parent=1 // pred_region
      %80 = dma.done [#allocation6], 128
    $region17: #{tpu_custom_call.1} parent=1 // pred_fallthru
      _
    %81 = vsyncpa [#allocation5], 1
    %82 = vsyncpa [#allocation6], 1

</llo_original>
